<compile_context>
chip_gen: v6e
topology: v6e:2x2x1
jax: 0.10.0
libtpu: 0.0.40
codegen_flags: <defaults>
</compile_context>

<pallas_src>
import functools

import jax
import jax.numpy as jnp
import numpy as np
from jax.experimental import pallas as pl
from jax.experimental.pallas import tpu as pltpu


def _round_up(x, m):
    return (x + m - 1) // m * m


# ----------------------------- parameter init ------------------------------ #

def _kaiming_normal_fan_out(key, shape):
    # shape = (out_ch, in_ch, kh, kw); fan_out = out_ch * kh * kw  (PyTorch)
    fan_out = shape[0] * shape[2] * shape[3]
    std = np.sqrt(2.0 / fan_out)
    return std * jax.random.normal(key, shape, dtype=jnp.float32)


def init_odconv_params(key, in_planes, out_planes, kernel_size,
                       reduction=0.0625, kernel_num=4, min_channel=16):
    attn_ch = max(int(in_planes * reduction), min_channel)
    keys = jax.random.split(key, 6)
    p = {"attn_ch": attn_ch}
    p["fc_w"] = _kaiming_normal_fan_out(keys[0], (attn_ch, in_planes, 1, 1))[:, :, 0, 0]
    p["bn_w"] = jnp.ones((attn_ch,), jnp.float32)
    p["bn_b"] = jnp.zeros((attn_ch,), jnp.float32)
    p["bn_mean"] = jnp.zeros((attn_ch,), jnp.float32)   # running stats at init
    p["bn_var"] = jnp.ones((attn_ch,), jnp.float32)
    p["channel_fc_w"] = _kaiming_normal_fan_out(keys[1], (in_planes, attn_ch, 1, 1))[:, :, 0, 0]
    p["channel_fc_b"] = jnp.zeros((in_planes,), jnp.float32)
    p["filter_fc_w"] = _kaiming_normal_fan_out(keys[2], (out_planes, attn_ch, 1, 1))[:, :, 0, 0]
    p["filter_fc_b"] = jnp.zeros((out_planes,), jnp.float32)
    p["spatial_fc_w"] = _kaiming_normal_fan_out(
        keys[3], (kernel_size * kernel_size, attn_ch, 1, 1))[:, :, 0, 0]
    p["spatial_fc_b"] = jnp.zeros((kernel_size * kernel_size,), jnp.float32)
    p["kernel_fc_w"] = _kaiming_normal_fan_out(keys[4], (kernel_num, attn_ch, 1, 1))[:, :, 0, 0]
    p["kernel_fc_b"] = jnp.zeros((kernel_num,), jnp.float32)
    wkeys = jax.random.split(keys[5], kernel_num)
    p["weight"] = jnp.stack(
        [_kaiming_normal_fan_out(wkeys[i], (out_planes, in_planes, kernel_size, kernel_size))
         for i in range(kernel_num)], axis=0)
    return p


# --------------------------- attention head (glue) -------------------------- #

def attention_forward(x, p, temperature=1.0, bn_eps=1e-5):
    # x: (B, C_in, H, W); tiny (B, C)-sized math -> plain JAX glue.
    pooled = jnp.mean(x, axis=(2, 3))                       # AdaptiveAvgPool2d(1)
    h = pooled @ p["fc_w"].T                                # 1x1 conv, no bias
    # BatchNorm2d with initialized running stats (inference-mode semantics).
    h = (h - p["bn_mean"]) / jnp.sqrt(p["bn_var"] + bn_eps) * p["bn_w"] + p["bn_b"]
    h = jnp.maximum(h, 0.0)                                 # ReLU
    ca = jax.nn.sigmoid((h @ p["channel_fc_w"].T + p["channel_fc_b"]) / temperature)
    fa = jax.nn.sigmoid((h @ p["filter_fc_w"].T + p["filter_fc_b"]) / temperature)
    sa = jax.nn.sigmoid((h @ p["spatial_fc_w"].T + p["spatial_fc_b"]) / temperature)
    ka = jax.nn.softmax((h @ p["kernel_fc_w"].T + p["kernel_fc_b"]) / temperature, axis=1)
    return ca, fa, sa, ka   # (B,Cin), (B,Cout), (B,K*K), (B,KN)


# ------------------------------ Pallas kernel ------------------------------- #

def _odconv_kernel(KN, xt_ref, w_ref, casa_ref, fa_ref, ka_ref, o_ref, wagg_ref):
    # xt_ref   : (1, KK*C_in, TN)    bf16 im2col taps tile for this (batch, n-tile)
    # w_ref    : (KN, C_out, KK*C_in) f32 weight bank (constant index_map, resident)
    # casa_ref : (1, 1, KK*C_in)     f32 channel*spatial attention, folded per column
    # fa_ref   : (1, C_out, 1)       f32 filter attention
    # ka_ref   : (B, KN)             f32 kernel attention (SMEM scalars)
    # o_ref    : (1, C_out, TN)
    # wagg_ref : (C_out, KK*C_in)    bf16 VMEM scratch — aggregated weight per batch
    b = pl.program_id(0)
    nt = pl.program_id(1)

    # Hoisted per-batch dynamic-weight aggregation: done once (first spatial
    # tile of each batch element), reused for every subsequent spatial tile.
    @pl.when(nt == 0)
    def _():
        w = ka_ref[b, 0] * w_ref[0]
        for t in range(1, KN):
            w = w + ka_ref[b, t] * w_ref[t]
        w = w * casa_ref[0]                                  # fold ca*sa (per kk,ci)
        wagg_ref[...] = w.astype(jnp.bfloat16)               # downcast once for MXU

    # Single fused matmul: (C_out, KK*C_in) x (KK*C_in, TN) with f32 accumulation.
    acc = jax.lax.dot_general(
        wagg_ref[...], xt_ref[0],
        dimension_numbers=(((1,), (0,)), ((), ())),
        preferred_element_type=jnp.float32)
    o_ref[0] = (acc * fa_ref[0]).astype(o_ref.dtype)          # filter attention


# ------------------------------ wrapper (glue) ------------------------------ #

def odconv2d_forward(x, params, *, kernel_size, stride=1, padding=1, dilation=1,
                     groups=1, kernel_num=4, temperature=1.0, spatial_tile=512):
    assert groups == 1  # TODO(synk): grouped-conv (groups>1) path not implemented in the kernel
    B, C_in, H, W = x.shape
    KN, C_out, _, K, _ = params["weight"].shape
    assert K == kernel_size and KN == kernel_num

    ca, fa, sa, ka = attention_forward(x, params, temperature)

    # im2col glue -> (B, KK, C_in, Ho*Wo).
    # TODO(synk): on bandwidth-limited chips (v5e) avoid the KKx HBM blow-up by
    # passing the padded input via memory_space=pl.ANY and forming the taps
    # inside the kernel with strided pl.ds reads from a VMEM-resident tile.
    xp = jnp.pad(x, ((0, 0), (0, 0), (padding, padding), (padding, padding)))
    Hp, Wp = H + 2 * padding, W + 2 * padding
    Ho = (Hp - dilation * (K - 1) - 1) // stride + 1
    Wo = (Wp - dilation * (K - 1) - 1) // stride + 1
    taps = []
    for kh in range(K):
        for kw in range(K):
            sl = xp[:, :,
                    kh * dilation: kh * dilation + (Ho - 1) * stride + 1: stride,
                    kw * dilation: kw * dilation + (Wo - 1) * stride + 1: stride]
            taps.append(sl.reshape(B, C_in, Ho * Wo))
    x_taps = jnp.stack(taps, axis=1)                          # (B, KK, C_in, N)
    KK, N = K * K, Ho * Wo
    KKC = KK * C_in

    # 128-aligned spatial tile; pad N so every block (and the output store) is
    # lane-dense and unmasked.
    TN = _round_up(min(spatial_tile, _round_up(N, 128)), 128)
    N_pad = _round_up(N, TN)
    x_taps = x_taps.reshape(B, KKC, N)
    if N_pad != N:
        x_taps = jnp.pad(x_taps, ((0, 0), (0, 0), (0, N_pad - N)))
    x_taps = x_taps.astype(jnp.bfloat16)                      # bf16 MXU operand / half the DMA bytes
    NT = N_pad // TN

    # Weight bank reordered tap-major so the (lane-dense) contraction axis
    # kk*C_in + ci matches x_taps: (KN, C_out, C_in, K, K) -> (KN, C_out, KK*C_in).
    w_r = jnp.transpose(params["weight"], (0, 1, 3, 4, 2)).reshape(KN, C_out, KKC)
    w_r = w_r.astype(jnp.float32)

    # Channel and spatial attention folded into one per-(tap, channel) scale.
    casa = (sa[:, :, None] * ca[:, None, :]).reshape(B, 1, KKC).astype(jnp.float32)
    fa_in = fa.reshape(B, C_out, 1).astype(jnp.float32)
    ka_in = ka.astype(jnp.float32)                            # (B, KN) SMEM scalars

    # Generation-aware VMEM budget (double-buffered tiles + resident weights),
    # kept conservative so it fits v7x's smaller VMEM as well.
    est = (2 * KKC * TN * 2                 # x-tap tile, bf16, double-buffered
           + 2 * C_out * TN * 4             # output tile, f32, double-buffered
           + KN * C_out * max(KKC, 128) * 4 # weight bank (lane-padded)
           + C_out * max(KKC, 128) * 2      # aggregated-weight scratch
           + (C_out + KKC) * 64)            # small attention vectors
    vmem_limit = int(min(max(4 * est, 16 * 2**20), 32 * 2**20))

    kernel = functools.partial(_odconv_kernel, KN)
    out = pl.pallas_call(
        kernel,
        out_shape=jax.ShapeDtypeStruct((B, C_out, N_pad), x.dtype),
        grid=(B, NT),
        in_specs=[
            pl.BlockSpec((1, KKC, TN), lambda b, nt: (b, 0, nt)),
            pl.BlockSpec((KN, C_out, KKC), lambda b, nt: (0, 0, 0)),
            pl.BlockSpec((1, 1, KKC), lambda b, nt: (b, 0, 0)),
            pl.BlockSpec((1, C_out, 1), lambda b, nt: (b, 0, 0)),
            pl.BlockSpec(memory_space=pltpu.MemorySpace.SMEM),
        ],
        out_specs=pl.BlockSpec((1, C_out, TN), lambda b, nt: (b, 0, nt)),
        scratch_shapes=[pltpu.VMEM((C_out, KKC), jnp.bfloat16)],
        compiler_params=pltpu.CompilerParams(
            dimension_semantics=("parallel", "arbitrary"),
            vmem_limit_bytes=vmem_limit),
    )(x_taps, w_r, casa, fa_in, ka_in)

    out = out[:, :, :N]                                       # drop spatial padding
    return out.reshape(B, C_out, Ho, Wo)


# --------------------------- pure-JAX reference ------------------------------ #

def odconv2d_reference(x, params, *, kernel_size, stride=1, padding=1, dilation=1,
                       groups=1, kernel_num=4, temperature=1.0):
    B, C_in, H, W = x.shape
    KN, C_out, _, K, _ = params["weight"].shape
    ca, fa, sa, ka = attention_forward(x, params, temperature)
    xs = x * ca[:, :, None, None]
    xs = xs.reshape(1, B * C_in, H, W)
    sa_r = sa.reshape(B, 1, 1, 1, K, K)
    ka_r = ka.reshape(B, KN, 1, 1, 1, 1)
    agg = jnp.sum(sa_r * ka_r * params["weight"][None], axis=1)     # (B, C_out, C_in, K, K)
    agg = agg.reshape(B * C_out, C_in // groups, K, K)
    out = jax.lax.conv_general_dilated(
        xs, agg, window_strides=(stride, stride),
        padding=[(padding, padding), (padding, padding)],
        rhs_dilation=(dilation, dilation),
        feature_group_count=groups * B,
        dimension_numbers=("NCHW", "OIHW", "NCHW"))
    out = out.reshape(B, C_out, out.shape[-2], out.shape[-1])
    return out * fa[:, :, None, None]


# ----------------------------------- main ------------------------------------ #

if __name__ == "__main__":
    key = jax.random.PRNGKey(0)
    kp, kx = jax.random.split(key)

    B, C_in, H, W = 2, 4, 16, 16
    C_out, K, KN = 8, 3, 4

    params = init_odconv_params(kp, C_in, C_out, K, kernel_num=KN)
    x = jax.random.normal(kx, (B, C_in, H, W), dtype=jnp.float32)

    out = odconv2d_forward(x, params, kernel_size=K, stride=1, padding=1,
                           dilation=1, groups=1, kernel_num=KN)
    out = jax.block_until_ready(out)

    ref = jax.block_until_ready(
        odconv2d_reference(x, params, kernel_size=K, stride=1, padding=1,
                           dilation=1, groups=1, kernel_num=KN))

    # Tolerance accounts for bf16 MXU operands (f32 accumulation) vs f32 reference.
    if not np.allclose(np.asarray(out), np.asarray(ref), atol=2e-2, rtol=2e-2):
        raise AssertionError("Pallas ODConv2d output mismatch vs pure-JAX reference")
    print("KERNEL_OK")
</pallas_src>

<mosaic_0001>
module attributes {stable_mosaic.version = 11 : i64} {
  func.func @_odconv_kernel(%arg0: i32, %arg1: i32, %arg2: memref<1x36x256xbf16, #tpu.memory_space<vmem>>, %arg3: memref<4x8x36xf32, #tpu.memory_space<vmem>>, %arg4: memref<1x1x36xf32, #tpu.memory_space<vmem>>, %arg5: memref<1x8x1xf32, #tpu.memory_space<vmem>>, %arg6: memref<2x4xf32, #tpu.memory_space<smem>>, %arg7: memref<1x8x256xf32, #tpu.memory_space<vmem>>, %arg8: memref<8x36xbf16, #tpu.memory_space<vmem>>) attributes {dimension_semantics = [#tpu.dimension_semantics<parallel>, #tpu.dimension_semantics<arbitrary>], iteration_bounds = array<i64: 2, 1>, scalar_prefetch = 0 : i64, scratch_operands = 1 : i64, tpu.core_type = #tpu.core_type<tc>, window_params = [{transform_indices = @transform_0, window_bounds = array<i64: 1, 36, 256>}, {pipeline_mode = #tpu.pipeline_mode<synchronous>, transform_indices = @transform_1, window_bounds = array<i64: 4, 8, 36>}, {transform_indices = @transform_2, window_bounds = array<i64: 1, 1, 36>}, {transform_indices = @transform_3, window_bounds = array<i64: 1, 8, 1>}, {transform_indices = @transform_4, window_bounds = array<i64: 2, 4>}, {transform_indices = @transform_5, window_bounds = array<i64: 1, 8, 256>}]} {
    %c0_i32 = arith.constant 0 : i32
    %0 = arith.cmpi eq, %arg1, %c0_i32 : i32
    %1 = arith.extui %0 : i1 to i32
    %c0_i32_0 = arith.constant 0 : i32
    %2 = arith.cmpi ne, %1, %c0_i32_0 : i32
    scf.if %2 {
      %14 = arith.index_cast %arg0 : i32 to index
      %c0_11 = arith.constant 0 : index
      %15 = memref.load %arg6[%14, %c0_11] : memref<2x4xf32, #tpu.memory_space<smem>>
      %c0_12 = arith.constant 0 : index
      %c0_13 = arith.constant 0 : index
      %c0_14 = arith.constant 0 : index
      %16 = vector.load %arg3[%c0_12, %c0_13, %c0_14] : memref<4x8x36xf32, #tpu.memory_space<vmem>>, vector<1x8x36xf32>
      %17 = vector.shape_cast %16 : vector<1x8x36xf32> to vector<8x36xf32>
      %18 = vector.broadcast %15 : f32 to vector<8x36xf32>
      %19 = arith.mulf %18, %17 : vector<8x36xf32>
      %20 = arith.index_cast %arg0 : i32 to index
      %c1 = arith.constant 1 : index
      %21 = memref.load %arg6[%20, %c1] : memref<2x4xf32, #tpu.memory_space<smem>>
      %c1_15 = arith.constant 1 : index
      %c0_16 = arith.constant 0 : index
      %c0_17 = arith.constant 0 : index
      %22 = vector.load %arg3[%c1_15, %c0_16, %c0_17] : memref<4x8x36xf32, #tpu.memory_space<vmem>>, vector<1x8x36xf32>
      %23 = vector.shape_cast %22 : vector<1x8x36xf32> to vector<8x36xf32>
      %24 = vector.broadcast %21 : f32 to vector<8x36xf32>
      %25 = arith.mulf %24, %23 : vector<8x36xf32>
      %26 = arith.addf %19, %25 : vector<8x36xf32>
      %27 = arith.index_cast %arg0 : i32 to index
      %c2 = arith.constant 2 : index
      %28 = memref.load %arg6[%27, %c2] : memref<2x4xf32, #tpu.memory_space<smem>>
      %c2_18 = arith.constant 2 : index
      %c0_19 = arith.constant 0 : index
      %c0_20 = arith.constant 0 : index
      %29 = vector.load %arg3[%c2_18, %c0_19, %c0_20] : memref<4x8x36xf32, #tpu.memory_space<vmem>>, vector<1x8x36xf32>
      %30 = vector.shape_cast %29 : vector<1x8x36xf32> to vector<8x36xf32>
      %31 = vector.broadcast %28 : f32 to vector<8x36xf32>
      %32 = arith.mulf %31, %30 : vector<8x36xf32>
      %33 = arith.addf %26, %32 : vector<8x36xf32>
      %34 = arith.index_cast %arg0 : i32 to index
      %c3 = arith.constant 3 : index
      %35 = memref.load %arg6[%34, %c3] : memref<2x4xf32, #tpu.memory_space<smem>>
      %c3_21 = arith.constant 3 : index
      %c0_22 = arith.constant 0 : index
      %c0_23 = arith.constant 0 : index
      %36 = vector.load %arg3[%c3_21, %c0_22, %c0_23] : memref<4x8x36xf32, #tpu.memory_space<vmem>>, vector<1x8x36xf32>
      %37 = vector.shape_cast %36 : vector<1x8x36xf32> to vector<8x36xf32>
      %38 = vector.broadcast %35 : f32 to vector<8x36xf32>
      %39 = arith.mulf %38, %37 : vector<8x36xf32>
      %40 = arith.addf %33, %39 : vector<8x36xf32>
      %c0_24 = arith.constant 0 : index
      %c0_25 = arith.constant 0 : index
      %c0_26 = arith.constant 0 : index
      %41 = vector.load %arg4[%c0_24, %c0_25, %c0_26] : memref<1x1x36xf32, #tpu.memory_space<vmem>>, vector<1x1x36xf32>
      %42 = vector.shape_cast %41 : vector<1x1x36xf32> to vector<1x36xf32>
      %43 = vector.broadcast %42 : vector<1x36xf32> to vector<8x36xf32>
      %44 = arith.mulf %40, %43 : vector<8x36xf32>
      %45 = arith.truncf %44 : vector<8x36xf32> to vector<8x36xbf16>
      %c0_27 = arith.constant 0 : index
      %c0_28 = arith.constant 0 : index
      %46 = vector.load %arg8[%c0_27, %c0_28] : memref<8x36xbf16, #tpu.memory_space<vmem>>, vector<8x36xbf16>
      tpu.vector_store %arg8[%c0_27, %c0_28], %45 {strides = array<i32>} : memref<8x36xbf16, #tpu.memory_space<vmem>>, vector<8x36xbf16>,
    } else {
    }
    %c0 = arith.constant 0 : index
    %c0_1 = arith.constant 0 : index
    %3 = vector.load %arg8[%c0, %c0_1] : memref<8x36xbf16, #tpu.memory_space<vmem>>, vector<8x36xbf16>
    %c0_2 = arith.constant 0 : index
    %c0_3 = arith.constant 0 : index
    %c0_4 = arith.constant 0 : index
    %4 = vector.load %arg2[%c0_2, %c0_3, %c0_4] : memref<1x36x256xbf16, #tpu.memory_space<vmem>>, vector<1x36x256xbf16>
    %5 = vector.shape_cast %4 : vector<1x36x256xbf16> to vector<36x256xbf16>
    %cst = arith.constant dense<0.000000e+00> : vector<8x256xf32>
    %6 = tpu.matmul %3, %5, %cst {dimension_numbers = #tpu.dot_dimension_numbers<[1], [0], [0], [1], [0, 0, 1, 1], [], []>} : vector<8x36xbf16>, vector<36x256xbf16>, vector<8x256xf32> -> vector<8x256xf32>
    %c0_5 = arith.constant 0 : index
    %c0_6 = arith.constant 0 : index
    %c0_7 = arith.constant 0 : index
    %7 = vector.load %arg5[%c0_5, %c0_6, %c0_7] : memref<1x8x1xf32, #tpu.memory_space<vmem>>, vector<1x8x1xf32>
    %8 = vector.shape_cast %7 : vector<1x8x1xf32> to vector<8x1xf32>
    %9 = vector.broadcast %8 : vector<8x1xf32> to vector<8x256xf32>
    %10 = arith.mulf %6, %9 : vector<8x256xf32>
    %c0_8 = arith.constant 0 : index
    %c0_9 = arith.constant 0 : index
    %c0_10 = arith.constant 0 : index
    %11 = vector.load %arg7[%c0_8, %c0_9, %c0_10] : memref<1x8x256xf32, #tpu.memory_space<vmem>>, vector<1x8x256xf32>
    %12 = vector.shape_cast %11 : vector<1x8x256xf32> to vector<8x256xf32>
    %13 = vector.shape_cast %10 : vector<8x256xf32> to vector<1x8x256xf32>
    tpu.vector_store %arg7[%c0_8, %c0_9, %c0_10], %13 {strides = array<i32>} : memref<1x8x256xf32, #tpu.memory_space<vmem>>, vector<1x8x256xf32>,
    return
  }
  func.func @transform_0(%arg0: i32, %arg1: i32) -> (i32, i32, i32) {
    %c0_i32 = arith.constant 0 : i32
    %c0_i32_0 = arith.constant 0 : i32
    return %arg0, %c0_i32, %arg1 : i32, i32, i32
  }
  func.func @transform_1(%arg0: i32, %arg1: i32) -> (i32, i32, i32) {
    %c0_i32 = arith.constant 0 : i32
    %c0_i32_0 = arith.constant 0 : i32
    %c0_i32_1 = arith.constant 0 : i32
    %c0_i32_2 = arith.constant 0 : i32
    return %c0_i32, %c0_i32_0, %c0_i32_1 : i32, i32, i32
  }
  func.func @transform_2(%arg0: i32, %arg1: i32) -> (i32, i32, i32) {
    %c0_i32 = arith.constant 0 : i32
    %c0_i32_0 = arith.constant 0 : i32
    %c0_i32_1 = arith.constant 0 : i32
    return %arg0, %c0_i32, %c0_i32_0 : i32, i32, i32
  }
  func.func @transform_3(%arg0: i32, %arg1: i32) -> (i32, i32, i32) {
    %c0_i32 = arith.constant 0 : i32
    %c0_i32_0 = arith.constant 0 : i32
    %c0_i32_1 = arith.constant 0 : i32
    return %arg0, %c0_i32, %c0_i32_0 : i32, i32, i32
  }
  func.func @transform_4(%arg0: i32, %arg1: i32) -> (i32, i32) {
    %c0_i32 = arith.constant 0 : i32
    %c0_i32_0 = arith.constant 0 : i32
    %c0_i32_1 = arith.constant 0 : i32
    return %c0_i32, %c0_i32_0 : i32, i32
  }
  func.func @transform_5(%arg0: i32, %arg1: i32) -> (i32, i32, i32) {
    %c0_i32 = arith.constant 0 : i32
    %c0_i32_0 = arith.constant 0 : i32
    return %arg0, %c0_i32, %arg1 : i32, i32, i32
  }
}

</mosaic_0001>

<llo_original>
// kernel: tpu_custom_call.1
$region0: #{tpu_custom_call.1}
  #allocation0 [shape = 'u32[]', space=smem, size = 0x4, offset = 0x4, fixed_abs, tag = 'smem constant byte address 0x4 - core index']
  #allocation1 [shape = 'u32[144,128]{1,0:T(1,128)}', space=vmem, size = 0x12000, scoped, tag = 'internal scratch']
  #allocation2 [shape = 'bf16[8,36]{1,0:T(8,128)(2,1)}', space=vmem, size = 0x800, scoped, tag = 'scratch operand']
  %s0 = inlined_call_operand.vmem [shape: bf16[2,36,256], index: 0, kind: input, shape index: {}]
  %s1 = inlined_call_operand.vmem [shape: f32[4,8,36], index: 1, kind: input, shape index: {}]
  %s2 = inlined_call_operand.vmem [shape: f32[2,1,36], index: 2, kind: input, shape index: {}]
  %s3 = inlined_call_operand.vmem [shape: f32[2,8,1], index: 3, kind: input, shape index: {}]
  %s4 = inlined_call_operand.vmem [shape: f32[2,4], index: 4, kind: input, shape index: {}]
  %s5 = inlined_call_operand.hbm [shape: f32[2,8,256], index: 5, kind: output, shape index: {}]
  %s6 = sld [smem:[#allocation0]]
  $region61: #{tpu_custom_call.1} parent=0
    _
  %s8 = ssub.s32 1, %s6
  %s9 = scalar_select 0, %s8, %s6
  $region1: #{tpu_custom_call.1} parent=0
    #allocation3 [shape = 'u8[1024]{0}', space=smem, size = 0x400, scoped, tag = 'input window, operand 4, single buffered']
    #allocation4 [shape = 's32[2]{0}', space=sflag, size = 0x8, scoped, tag = 'scoped memory for tpu_custom_call.1']
    #allocation5 [shape = 's32[2]{0}', space=sflag, size = 0x8, scoped, tag = 'scoped memory for tpu_custom_call.1']
    #allocation6 [shape = 'u8[16384]{0}', space=vmem, size = 0x4000, scoped, tag = 'output window, operand 0']
    %10 = vsyncpa [#allocation5], 0
    %11 = vsyncpa [#allocation4], 0
    %s12 = scalar_lea.sflag [#allocation4], 1
    %13 = vsyncpa %s12, 0
    loop: start=0, step=1, limit=4
    $region2: #{tpu_custom_call.1} parent=1 // loop_pre_header
      _
    $region3: #{tpu_custom_call.1} parent=1 // loop_header
      %s15 = sphi 0, %s19
      %p16 = scmp.ge.s32.totalorder %s15, 4
      %s22 = sphi 0, %s34
      %s23 = sphi 0, %s30
      %s24 = sphi 0, %s22
      %s25 = sphi 0, %s23
      %s26 = sphi 0, %s24
      %s27 = sphi 0, %s25
      %s39 = sphi 0, %s41
      %s42 = sphi 0, %s39
      %s43 = sphi 0, %s42
      %s59 = sphi 0, %s43
      %s63 = sphi 0, %s63
      %s65 = sphi 0, %s63
      %s66 = sphi 0, %s65
      %s80 = sphi 0, %s66
      %s86 = sphi 0, %s88
      %s89 = sphi 0, %s86
      %s90 = sphi 0, %s89
      %s106 = sphi 0, %s90
      %s112 = sphi 0, %s114
      %s115 = sphi 0, %s112
      %s116 = sphi 0, %s115
      %s132 = sphi 0, %s116
      %s136 = sphi 0, %s136
      %s138 = sphi 0, %s136
      %s139 = sphi 0, %s138
      %s153 = sphi 0, %s139
      %s161 = sphi 0, %s163
      %s164 = sphi 0, %s161
      %s165 = sphi 0, %s164
      %s181 = sphi 0, %s165
    $region4: #{tpu_custom_call.1} parent=1 // loop_header_branch
      %18 = sbr.rel (%p16) target = $region8
    $region5: #{tpu_custom_call.1} parent=1 // loop_body
      %s20 = ssub.s32 %s15, 1
      %s21 = ssub.s32 %s15, 2
      %s28 = sadd.s32 1, %s23
      %p29 = scmp.ge.s32.totalorder %s28, 1
      %s30 = scalar_select %p29, 0, %s28
      %s31 = sadd.s32 1, %s22
      %s32 = scalar_select %p29, %s31, %s22
      %p33 = scmp.ge.s32.totalorder %s32, 2
      %s34 = scalar_select %p33, 0, %s32
      %s35 = ssub.s32 %s22, %s34
      %s36 = ssub.s32 %s23, %s30
      %s37 = sor.u32 %s35, %s36
      %p38 = scmp.eq.s32.totalorder %s37, 0
      %s40 = sadd.s32 %s39, 1
      %s41 = scalar_select %p38, %s39, %s40
      %p44 = pneg %p38
      %p45 = scmp.eq.s32.totalorder %s15, 1
      %p46 = por %p44, %p45
      %p47 = scmp.ne.s32.totalorder %s39, %s42
      %p48 = scmp.eq.s32.totalorder %s15, 0
      %p49 = por %p47, %p48
      %p50 = scmp.ne.s32.totalorder %s39, %s42
      %p51 = scmp.eq.s32.totalorder %s20, 1
      %p52 = por %p50, %p51
      %p53 = scmp.ne.s32.totalorder %s42, %s43
      %p54 = scmp.eq.s32.totalorder %s20, 0
      %p55 = por %p53, %p54
      %p56 = scmp.ne.s32.totalorder %s42, %s43
      %p57 = scmp.eq.s32.totalorder %s21, 1
      %p58 = por %p56, %p57
      %p60 = scmp.ne.s32.totalorder %s43, %s59
      %p61 = scmp.eq.s32.totalorder %s21, 0
      %p62 = por %p60, %p61
      %s64 = sadd.s32 %s63, 1
      %p67 = scmp.eq.s32.totalorder %s15, 1
      %p68 = scmp.ne.s32.totalorder %s63, %s65
      %p69 = scmp.eq.s32.totalorder %s15, 0
      %p70 = por %p68, %p69
      %p71 = scmp.ne.s32.totalorder %s63, %s65
      %p72 = scmp.eq.s32.totalorder %s20, 1
      %p73 = por %p71, %p72
      %p74 = scmp.ne.s32.totalorder %s65, %s66
      %p75 = scmp.eq.s32.totalorder %s20, 0
      %p76 = por %p74, %p75
      %p77 = scmp.ne.s32.totalorder %s65, %s66
      %p78 = scmp.eq.s32.totalorder %s21, 1
      %p79 = por %p77, %p78
      %p81 = scmp.ne.s32.totalorder %s66, %s80
      %p82 = scmp.eq.s32.totalorder %s21, 0
      %p83 = por %p81, %p82
      %s84 = ssub.s32 %s22, %s34
      %p85 = scmp.eq.s32.totalorder %s84, 0
      %s87 = sadd.s32 %s86, 1
      %s88 = scalar_select %p85, %s86, %s87
      %p91 = pneg %p85
      %p92 = scmp.eq.s32.totalorder %s15, 1
      %p93 = por %p91, %p92
      %p94 = scmp.ne.s32.totalorder %s86, %s89
      %p95 = scmp.eq.s32.totalorder %s15, 0
      %p96 = por %p94, %p95
      %p97 = scmp.ne.s32.totalorder %s86, %s89
      %p98 = scmp.eq.s32.totalorder %s20, 1
      %p99 = por %p97, %p98
      %p100 = scmp.ne.s32.totalorder %s89, %s90
      %p101 = scmp.eq.s32.totalorder %s20, 0
      %p102 = por %p100, %p101
      %p103 = scmp.ne.s32.totalorder %s89, %s90
      %p104 = scmp.eq.s32.totalorder %s21, 1
      %p105 = por %p103, %p104
      %p107 = scmp.ne.s32.totalorder %s90, %s106
      %p108 = scmp.eq.s32.totalorder %s21, 0
      %p109 = por %p107, %p108
      %s110 = ssub.s32 %s22, %s34
      %p111 = scmp.eq.s32.totalorder %s110, 0
      %s113 = sadd.s32 %s112, 1
      %s114 = scalar_select %p111, %s112, %s113
      %p117 = pneg %p111
      %p118 = scmp.eq.s32.totalorder %s15, 1
      %p119 = por %p117, %p118
      %p120 = scmp.ne.s32.totalorder %s112, %s115
      %p121 = scmp.eq.s32.totalorder %s15, 0
      %p122 = por %p120, %p121
      %p123 = scmp.ne.s32.totalorder %s112, %s115
      %p124 = scmp.eq.s32.totalorder %s20, 1
      %p125 = por %p123, %p124
      %p126 = scmp.ne.s32.totalorder %s115, %s116
      %p127 = scmp.eq.s32.totalorder %s20, 0
      %p128 = por %p126, %p127
      %p129 = scmp.ne.s32.totalorder %s115, %s116
      %p130 = scmp.eq.s32.totalorder %s21, 1
      %p131 = por %p129, %p130
      %p133 = scmp.ne.s32.totalorder %s116, %s132
      %p134 = scmp.eq.s32.totalorder %s21, 0
      %p135 = por %p133, %p134
      %s137 = sadd.s32 %s136, 1
      %p140 = scmp.eq.s32.totalorder %s15, 1
      %p141 = scmp.ne.s32.totalorder %s136, %s138
      %p142 = scmp.eq.s32.totalorder %s15, 0
      %p143 = por %p141, %p142
      %p144 = scmp.ne.s32.totalorder %s136, %s138
      %p145 = scmp.eq.s32.totalorder %s20, 1
      %p146 = por %p144, %p145
      %p147 = scmp.ne.s32.totalorder %s138, %s139
      %p148 = scmp.eq.s32.totalorder %s20, 0
      %p149 = por %p147, %p148
      %p150 = scmp.ne.s32.totalorder %s138, %s139
      %p151 = scmp.eq.s32.totalorder %s21, 1
      %p152 = por %p150, %p151
      %p154 = scmp.ne.s32.totalorder %s139, %s153
      %p155 = scmp.eq.s32.totalorder %s21, 0
      %p156 = por %p154, %p155
      %s157 = ssub.s32 %s22, %s34
      %s158 = ssub.s32 %s23, %s30
      %s159 = sor.u32 %s157, %s158
      %p160 = scmp.eq.s32.totalorder %s159, 0
      %s162 = sadd.s32 %s161, 1
      %s163 = scalar_select %p160, %s161, %s162
      %p166 = pneg %p160
      %p167 = scmp.eq.s32.totalorder %s15, 1
      %p168 = por %p166, %p167
      %p169 = scmp.ne.s32.totalorder %s161, %s164
      %p170 = scmp.eq.s32.totalorder %s15, 0
      %p171 = por %p169, %p170
      %p172 = scmp.ne.s32.totalorder %s161, %s164
      %p173 = scmp.eq.s32.totalorder %s20, 1
      %p174 = por %p172, %p173
      %p175 = scmp.ne.s32.totalorder %s164, %s165
      %p176 = scmp.eq.s32.totalorder %s20, 0
      %p177 = por %p175, %p176
      %p178 = scmp.ne.s32.totalorder %s164, %s165
      %p179 = scmp.eq.s32.totalorder %s21, 1
      %p180 = por %p178, %p179
      %p182 = scmp.ne.s32.totalorder %s165, %s181
      %p183 = scmp.eq.s32.totalorder %s21, 0
      %p184 = por %p182, %p183
      %p185 = scmp.le.s32.totalorder 1, %s15
      %p186 = scmp.lt.s32.totalorder %s15, 3
      %p187 = pnand %p185, %p186
      %p188 = pneg %p187
      // Predicated region
      $region9: #{tpu_custom_call.1} parent=5 // pred_check
        _
      $region10: #{tpu_custom_call.1} parent=5 // pred_check_branch
        %190 = sbr.rel (%p187) target = $region12
      $region11: #{tpu_custom_call.1} parent=5 // pred_region
        %s191 = ssub.s32 %s15, 1
        // Predicated region
        $region13: #{tpu_custom_call.1} parent=11 // pred_check
          %p192 = pneg %p76
        $region14: #{tpu_custom_call.1} parent=11 // pred_check_branch
          %194 = sbr.rel (%p192) target = $region16
        $region15: #{tpu_custom_call.1} parent=11 // pred_region
          _
        $region16: #{tpu_custom_call.1} parent=11 // pred_fallthru
          _
        // Predicated region
        $region17: #{tpu_custom_call.1} parent=11 // pred_check
          %p195 = pneg %p149
        $region18: #{tpu_custom_call.1} parent=11 // pred_check_branch
          %197 = sbr.rel (%p195) target = $region20
        $region19: #{tpu_custom_call.1} parent=11 // pred_region
          %s199 = ssub.s32 32, 32
          %200 = vsyncadd [#allocation5], %s199
          %s202 = sshll.u32 %s4, 4
          %s203 = int_to_ptr.vmem [resolvable:$true] %s202
          %205 = dma.vmem_to_smem %s203, 32, [#allocation3], [#allocation5]
        $region20: #{tpu_custom_call.1} parent=11 // pred_fallthru
          _
      $region12: #{tpu_custom_call.1} parent=5 // pred_fallthru
        _
      %p206 = scmp.lt.s32.totalorder %s15, 2
      // Predicated region
      $region21: #{tpu_custom_call.1} parent=5 // pred_check
        %p207 = pneg %p206
      $region22: #{tpu_custom_call.1} parent=5 // pred_check_branch
        %209 = sbr.rel (%p207) target = $region24
      $region23: #{tpu_custom_call.1} parent=5 // pred_region
        // Predicated region
        $region25: #{tpu_custom_call.1} parent=23 // pred_check
          %p210 = pneg %p49
        $region26: #{tpu_custom_call.1} parent=23 // pred_check_branch
          %212 = sbr.rel (%p210) target = $region28
        $region27: #{tpu_custom_call.1} parent=23 // pred_region
          %s213 = smul.u32 2, %s23
          %p214 = scmp.lt.s32.totalorder %s22, 1
          %s215 = scalar_select %p214, %s22, 1
          %p216 = scmp.lt.s32.totalorder %s213, 1
          %s217 = scalar_select %p216, %s213, 1
          %s218 = smul.addr %s215, 10
          %s219 = sadd.s32 %s217, %s218
          %s220 = smul.addr %s219, 4
          %s221 = scalar_lea.vmem %s0, %s220
          %s222 = smul.u32 2, %s23
        $region28: #{tpu_custom_call.1} parent=23 // pred_fallthru
          _
        // Predicated region
        $region29: #{tpu_custom_call.1} parent=23 // pred_check
          %p223 = pneg %p96
        $region30: #{tpu_custom_call.1} parent=23 // pred_check_branch
          %225 = sbr.rel (%p223) target = $region32
        $region31: #{tpu_custom_call.1} parent=23 // pred_region
          %p226 = scmp.lt.s32.totalorder %s22, 1
          %s227 = scalar_select %p226, %s22, 1
          %s228 = scalar_lea.vmem %s2, %s227
        $region32: #{tpu_custom_call.1} parent=23 // pred_fallthru
          _
        // Predicated region
        $region33: #{tpu_custom_call.1} parent=23 // pred_check
          %p229 = pneg %p122
        $region34: #{tpu_custom_call.1} parent=23 // pred_check_branch
          %231 = sbr.rel (%p229) target = $region36
        $region35: #{tpu_custom_call.1} parent=23 // pred_region
          %p232 = scmp.lt.s32.totalorder %s22, 1
          %s233 = scalar_select %p232, %s22, 1
          %s234 = smul.addr %s233, 8
          %s235 = scalar_lea.vmem %s3, %s234
        $region36: #{tpu_custom_call.1} parent=23 // pred_fallthru
          _
      $region24: #{tpu_custom_call.1} parent=5 // pred_fallthru
        _
      %p236 = scmp.le.s32.totalorder 1, %s15
      %p237 = scmp.lt.s32.totalorder %s15, 3
      %p238 = pnand %p236, %p237
      %p239 = pneg %p238
      // Predicated region
      $region37: #{tpu_custom_call.1} parent=5 // pred_check
        _
      $region38: #{tpu_custom_call.1} parent=5 // pred_check_branch
        %241 = sbr.rel (%p238) target = $region40
      $region39: #{tpu_custom_call.1} parent=5 // pred_region
        %s242 = ssub.s32 %s15, 1
        // Predicated region
        $region41: #{tpu_custom_call.1} parent=39 // pred_check
          %p243 = pneg %p149
        $region42: #{tpu_custom_call.1} parent=39 // pred_check_branch
          %245 = sbr.rel (%p243) target = $region44
        $region43: #{tpu_custom_call.1} parent=39 // pred_region
          %246 = dma.done [#allocation5], 32
        $region44: #{tpu_custom_call.1} parent=39 // pred_fallthru
          _
        %247 = sfence
        %s248 = smul.u32 2, %s25
        %p249 = scmp.lt.s32.totalorder %s24, 1
        %s250 = scalar_select %p249, %s24, 1
        %p251 = scmp.lt.s32.totalorder %s248, 1
        %s252 = scalar_select %p251, %s248, 1
        %s253 = smul.addr %s250, 10
        %s254 = sadd.s32 %s252, %s253
        %s255 = smul.addr %s254, 4
        %s256 = scalar_lea.vmem %s0, %s255
        %p257 = pneg %p55
        %p258 = pneg %p52
        %p259 = pneg %p76
        %p260 = pneg %p73
        %p261 = scmp.lt.s32.totalorder %s24, 1
        %s262 = scalar_select %p261, %s24, 1
        %s263 = scalar_lea.vmem %s2, %s262
        %p264 = pneg %p102
        %p265 = pneg %p99
        %p266 = scmp.lt.s32.totalorder %s24, 1
        %s267 = scalar_select %p266, %s24, 1
        %s268 = smul.addr %s267, 8
        %s269 = scalar_lea.vmem %s3, %s268
        %p270 = pneg %p128
        %p271 = pneg %p125
        %p272 = pneg %p149
        %p273 = pneg %p146
        %p274 = pneg %p177
        %p275 = pneg %p174
        %s276 = sand.u32 %s164, 1
        %s277 = scalar_lea.sflag [#allocation4], %s276
        %s278 = sand.u32 %s164, 1
        %s279 = smul.addr %s278, 16
        %s280 = scalar_lea.vmem [#allocation6], %s279
        %s281 = smul.u32 2, %s25
        %p282 = scmp.lt.s32.totalorder %s24, 1
        %s283 = scalar_select %p282, %s24, 1
        %p284 = scmp.lt.s32.totalorder %s281, 1
        %s285 = scalar_select %p284, %s281, 1
        %s286 = smul.addr %s283, 10
        %s287 = sadd.s32 %s285, %s286
        %s288 = smul.addr %s287, 4
        %s289 = scalar_lea.vmem %s0, %s288
        %s290 = smul.u32 2, %s25
        %p291 = scmp.lt.s32.totalorder %s24, 1
        %s292 = scalar_select %p291, %s24, 1
        %s293 = scalar_lea.vmem %s2, %s292
        %p294 = scmp.lt.s32.totalorder %s24, 1
        %s295 = scalar_select %p294, %s24, 1
        %s296 = smul.addr %s295, 8
        %s297 = scalar_lea.vmem %s3, %s296
        %s298 = smul.u32 2, %s25
        %p300 = scmp.eq.s32.totalorder %s25, 0
        // Predicated region
        $region45: #{tpu_custom_call.1} parent=39 // pred_check
          %p301 = pneg %p300
        $region46: #{tpu_custom_call.1} parent=39 // pred_check_branch
          %303 = sbr.rel (%p301) target = $region48
        $region47: #{tpu_custom_call.1} parent=39 // pred_region
          %s304 = smul.u32 %s24, 128
          %s305 = sld [smem:[#allocation3 + %s304]]
          %v306 = vld [vmem:[%s1] sm:$0xff]
          %v307 = vstv %s305
          %v308 = vmul.f32 %v307, %v306
          %s309 = sadd.s32 %s304, 1
          %s310 = sld [smem:[#allocation3 + %s309]]
          %s311 = scalar_lea.vmem %s1, 8
          %v312 = vld [vmem:[%s311] sm:$0xff]
          %v313 = vstv %s310
          %v314 = vmul.f32 %v313, %v312
          %v315 = vadd.f32 %v308, %v314
          %s316 = sadd.s32 %s304, 2
          %s317 = sld [smem:[#allocation3 + %s316]]
          %s318 = scalar_lea.vmem %s1, 16
          %v319 = vld [vmem:[%s318] sm:$0xff]
          %v320 = vstv %s317
          %v321 = vmul.f32 %v320, %v319
          %v322 = vadd.f32 %v315, %v321
          %s323 = sadd.s32 %s304, 3
          %s324 = sld [smem:[#allocation3 + %s323]]
          %s325 = scalar_lea.vmem %s1, 24
          %v326 = vld [vmem:[%s325] sm:$0xff]
          %v327 = vstv %s324
          %v328 = vmul.f32 %v327, %v326
          %v329 = vadd.f32 %v322, %v328
          %v330 = vld [vmem:[%s293] sm:$0x1]
          %v332 = vlaneseq
          %v333 = vshrl.u32 %v332, 7
          %v334 = vsub.s32 0, %v333
          %v335 = vrot.slane %v330, %v334
          %v337 = vmul.f32 %v329, %v335
          %v338 = vpack.c.bf16 %v337, %v337
          %vm339 = vcmask 289792
          %340 = vst.msk [vmem:[#allocation2] sm:$0xf] %vm339, %v338
        $region48: #{tpu_custom_call.1} parent=39 // pred_fallthru
          _
        %v341 = vld [vmem:[#allocation2] sm:$0xf]
        %v342 = vld [vmem:[%s289] sm:$0xff]
        %v343 = vld [vmem:[%s289 + $0x8] sm:$0xff]
        %v344 = vld [vmem:[%s289 + $0x10] sm:$0xff]
        %v345 = vld [vmem:[%s289 + $0x18] sm:$0xff]
        %v346 = vld [vmem:[%s289 + $0x20] sm:$0x33]
        %v352 = vunpack.c.l.b16 %v342
        %v353 = vunpack.c.h.b16 %v342
        %v354 = vunpack.c.l.b16 %v343
        %v355 = vunpack.c.h.b16 %v343
        %v356 = vunpack.c.l.b16 %v344
        %v357 = vunpack.c.h.b16 %v344
        %v358 = vunpack.c.l.b16 %v345
        %v359 = vunpack.c.h.b16 %v345
        %v360 = vunpack.c.l.b16 %v346
        %v361 = vunpack.c.h.b16 %v346
        %v362 = vpack.c.b16 %v354, %v352
        %v363 = vpack.c.b16 %v355, %v353
        %v364 = vpack.c.b16 %v358, %v356
        %v365 = vpack.c.b16 %v359, %v357
        %v366 = vpack.c.b16 %v360, %v360
        %v367 = vpack.c.b16 %v361, %v361
        %vm372 = vcmask 293888
        %v374 = vsel %vm372, %v341, 0
        %vm376 = vcmask 1041408
        %v378 = vsel %vm376, %v366, 0
        %v381 = vsel %vm376, %v367, 0
        %383 = vmatprep.subr.bf16.mxu0 0
        %384 = vmatpush1.bf16.msra.mxu0 0
        %385 = vmatprep.subr.bf16.mxu0 0
        %386 = vmatpush1.bf16.msra.mxu0 0
        %387 = vmatprep.subr.bf16.mxu0 0
        %388 = vmatpush1.bf16.msra.mxu0 0
        %389 = vmatprep.subr.bf16.mxu0 0
        %390 = vmatpush1.bf16.msra.mxu0 0
        %391 = vmatprep.subr.bf16.mxu0 0
        %392 = vmatpush1.bf16.msra.mxu0 0
        %393 = vmatprep.subr.bf16.mxu0 %v381
        %394 = vmatpush1.bf16.msra.mxu0 %v378
        %395 = vmatprep.subr.bf16.mxu0 %v365
        %396 = vmatpush1.bf16.msra.mxu0 %v364
        %397 = vmatprep.subr.bf16.mxu0 %v363
        %398 = vmatpush1.bf16.msra.mxu0 %v362
        %399 = vmatprep.subr.bf16.mxu0 0
        %400 = vmatpush2.bf16.msra.mxu0 0
        %401 = vmatprep.subr.bf16.mxu0 0
        %402 = vmatpush2.bf16.msra.mxu0 0
        %403 = vmatprep.subr.bf16.mxu0 0
        %404 = vmatpush2.bf16.msra.mxu0 0
        %405 = vmatprep.subr.bf16.mxu0 0
        %406 = vmatpush2.bf16.msra.mxu0 0
        %407 = vmatprep.subr.bf16.mxu0 0
        %408 = vmatpush2.bf16.msra.mxu0 0
        %409 = vmatprep.subr.bf16.mxu0 0
        %410 = vmatpush2.bf16.msra.mxu0 0
        %411 = vmatprep.subr.bf16.mxu0 0
        %412 = vmatpush2.bf16.msra.mxu0 0
        %413 = vmatprep.subr.bf16.mxu0 0
        %414 = vmatpush2.bf16.msra.mxu0 0
        %415 = vmatprep.mubr.bf16.mxu0 0
        %416 = vmatmul.mubr.bf16.gmra.mxu0 %v374
        %v417 = vpop.f32.mrf.mxu0
        %v418 = vadd.f32 0.0, %v417
        %v419 = vpop.f32.mrf.mxu0
        %v420 = vadd.f32 0.0, %v419
        %v421 = vpop.f32.mrf.mxu0
        %v422 = vpop.f32.mrf.mxu0
        %423 = vdwg.mxu0
        %v424 = vld [vmem:[%s297] sm:$0xff]
        %426 = vset.pattern.permute.xlu0 0
        %427 = vperm.xlu0 %426, %v424
        %v428 = vpop.permute.xlu0 %427
        %v430 = vmul.f32 %v418, %v428
        %v431 = vmul.f32 %v420, %v428
        %432 = vst [vmem:[%s280] sm:$0xff] %v430
        %433 = vst [vmem:[%s280 + $0x8] sm:$0xff] %v431
        %s434 = sand.u32 %s164, 1
        %s435 = scalar_lea.sflag [#allocation4], %s434
        %s436 = sand.u32 %s164, 1
        %s437 = smul.addr %s436, 16
        %s438 = scalar_lea.vmem [#allocation6], %s437
        // Predicated region
        $region49: #{tpu_custom_call.1} parent=39 // pred_check
          %p439 = pneg %p174
        $region50: #{tpu_custom_call.1} parent=39 // pred_check_branch
          %441 = sbr.rel (%p439) target = $region52
        $region51: #{tpu_custom_call.1} parent=39 // pred_region
          %s442 = smul.u32 2, %s25
          %s444 = ssub.s32 256, 256
          %445 = vsyncadd %s435, %s444
          %s446 = smul.addr %s24, 2
          %s447 = sadd.s32 %s442, %s446
          %s448 = smul.addr %s447, 128
          %s449 = scalar_lea.hbm %s5, %s448
          %s451 = sshll.u32 %s438, 4
          %s452 = int_to_ptr.vmem [resolvable:$true] %s451
          %454 = dma.vmem_to_hbm [thread:$0]  %s452, 256, %s449, %s435
        $region52: #{tpu_custom_call.1} parent=39 // pred_fallthru
          _
      $region40: #{tpu_custom_call.1} parent=5 // pred_fallthru
        _
      %p455 = scmp.le.s32.totalorder 2, %s15
      // Predicated region
      $region53: #{tpu_custom_call.1} parent=5 // pred_check
        %p456 = pneg %p455
      $region54: #{tpu_custom_call.1} parent=5 // pred_check_branch
        %458 = sbr.rel (%p456) target = $region56
      $region55: #{tpu_custom_call.1} parent=5 // pred_region
        %s459 = ssub.s32 %s15, 2
        // Predicated region
        $region57: #{tpu_custom_call.1} parent=55 // pred_check
          %p460 = pneg %p180
        $region58: #{tpu_custom_call.1} parent=55 // pred_check_branch
          %462 = sbr.rel (%p460) target = $region60
        $region59: #{tpu_custom_call.1} parent=55 // pred_region
          %s463 = sand.u32 %s165, 1
          %s464 = scalar_lea.sflag [#allocation4], %s463
          %s465 = sand.u32 %s165, 1
          %s466 = smul.addr %s465, 16
          %s467 = scalar_lea.vmem [#allocation6], %s466
          %468 = dma.done %s464, 256
        $region60: #{tpu_custom_call.1} parent=55 // pred_fallthru
          _
      $region56: #{tpu_custom_call.1} parent=5 // pred_fallthru
        _
    $region6: #{tpu_custom_call.1} parent=1 // loop_footer
      %s19 = sadd.s32 1, %s15
    $region7: #{tpu_custom_call.1} parent=1 // loop_footer_branch
      %14 = sbr.rel target = $region3
    $region8: #{tpu_custom_call.1} parent=1 // loop_exit
      _
    %469 = vsyncpa [#allocation4], 1
    %s470 = scalar_lea.sflag [#allocation4], 1
    %471 = vsyncpa %s470, 1
    %472 = vsyncpa [#allocation5], 1
    %s473 = scalar_lea.sflag [#allocation5], 1
    %474 = vsyncpa %s473, 1

</llo_original>
